<compile_context>
chip_gen: v5e
topology: v5e:2x2
jax: 0.10.0
libtpu: 0.0.40
codegen_flags: <defaults>
</compile_context>

<pallas_src>
import functools
import math

import jax
import jax.numpy as jnp
from jax.experimental import pallas as pl
from jax.experimental.pallas import tpu as pltpu


def _equalized_conv_kernel(x_ref, ht_ref, hb_ref, w_ref, b_ref, o_ref,
                           xp_ref, *opt_scratch,
                           C_in, C_pad, W, K, TH, use_im2col):
    """One grid step = (batch n, row-tile t).

    x_ref:   (C_in, TH*W)            row tile of the image (NCHW, spatial flat)
    ht_ref:  (C_in, pad*W)           rows just above the tile (zeros at top)
    hb_ref:  (C_in, pad*W)           rows just below the tile (zeros at bottom)
    w_ref:   (C_out, K*K*C_pad)      pre-scaled weights, col = tap*C_pad + ci
    b_ref:   (C_out, 1)              pre-scaled bias (f32)
    o_ref:   (C_out, TH*W)           output row tile (flattened NCHW)
    xp_ref:  (C_pad, (TH+2p)*W+2p)   vertically padded flat window (VMEM scratch)
    opt_scratch[0] (if use_im2col):
             (K*K*C_pad, TH*W)       im2col matrix (VMEM scratch)
    """
    pad = K // 2
    TW = TH * W
    L = (TH + 2 * pad) * W + 2 * pad

    # ---- in-kernel "SAME" vertical padding -----------------------------------
    # Only zero what the halo / x writes below do NOT cover (two pad-wide
    # stripes + any channel-pad rows); no full zero-fill pass.
    xp_ref[:, :pad] = jnp.zeros((C_pad, pad), xp_ref.dtype)
    xp_ref[:, pad + 2 * pad * W + TW:] = jnp.zeros((C_pad, pad), xp_ref.dtype)
    if C_pad > C_in:
        xp_ref[C_in:, :] = jnp.zeros((C_pad - C_in, L), xp_ref.dtype)
    xp_ref[:C_in, pad:pad + pad * W] = ht_ref[...]
    xp_ref[:C_in, pad + pad * W:pad + pad * W + TW] = x_ref[...]
    xp_ref[:C_in, pad + pad * W + TW:pad + 2 * pad * W + TW] = hb_ref[...]

    # ---- horizontal SAME masks, hoisted out of the tap loop ------------------
    # Shifting in flat space wraps across image rows at the left/right edges;
    # those positions are exactly the SAME-padding columns -> mask them to 0.
    col = jax.lax.broadcasted_iota(jnp.int32, (1, TW), 1) % W
    masks = {}
    for s in range(-pad, pad + 1):
        if s < 0:
            masks[s] = col >= -s
        elif s > 0:
            masks[s] = col < W - s

    def tap_block(kh, kw):
        shift = kw - pad
        blk = xp_ref[:, kh * W + kw:kh * W + kw + TW]          # (C_pad, TW)
        if shift != 0:
            blk = jnp.where(masks[shift], blk, jnp.zeros_like(blk))
        return blk

    if use_im2col:
        # Small C_in: build (fan_in_padded, TW) once, one big MXU contraction.
        pat_ref = opt_scratch[0]
        for kh in range(K):
            for kw in range(K):
                tap = kh * K + kw
                pat_ref[tap * C_pad:(tap + 1) * C_pad, :] = tap_block(kh, kw)
        acc = jnp.dot(w_ref[...], pat_ref[...],
                      preferred_element_type=jnp.float32)
    else:
        # Large C_in: per-tap matmuls are already MXU-efficient; skip im2col
        # materialization (saves 9x tile stores + the largest VMEM buffer).
        acc = None
        for kh in range(K):
            for kw in range(K):
                tap = kh * K + kw
                d = jnp.dot(w_ref[:, tap * C_pad:(tap + 1) * C_pad],
                            tap_block(kh, kw),
                            preferred_element_type=jnp.float32)
                acc = d if acc is None else acc + d

    o_ref[...] = (acc + b_ref[...]).astype(o_ref.dtype)         # (C_out, TH*W)


def _choose_row_tile(H, W, N, pad, est_fn, budget_bytes):
    """Largest row-tile height TH (dividing H) whose estimated VMEM footprint
    fits `budget_bytes` and whose flattened output block (TH*W) is lane-dense
    (multiple of 128) or full.  Only prefers TH < H when the batch axis alone
    would leave the grid with a single step (no pipelining / second core)."""
    cands = [d for d in range(1, H + 1)
             if H % d == 0 and d >= pad and ((d * W) % 128 == 0 or d == H)]
    if not cands:
        cands = [H]
    fitting = [d for d in cands if est_fn(d) <= budget_bytes]
    if not fitting:
        return min(cands, key=est_fn)
    best = max(fitting)
    if N == 1 and best == H:
        smaller = [d for d in fitting if d < H]
        if smaller:
            best = max(smaller)
    return best


def constrained_conv2d(x_nchw, weight_oihw, bias, *, lr_mul=1.0,
                       compute_dtype=jnp.bfloat16, row_tile=None,
                       im2col_threshold=128):
    """Equivalent of ConstrainedLayer(nn.Conv2d(Cin, Cout, K, padding=K//2)).forward."""
    N, C_in, H, W = x_nchw.shape
    C_out, c_in_w, K, k_w = weight_oihw.shape
    assert c_in_w == C_in and k_w == K and K % 2 == 1, "odd square kernels only"
    pad = K // 2
    out_dtype = x_nchw.dtype
    out_is = jnp.dtype(out_dtype).itemsize
    cs = jnp.dtype(compute_dtype).itemsize

    # Sublane-pack alignment of the per-tap channel block (8 for f32, 16 bf16).
    pack = max(8, 32 // cs)
    C_pad = ((C_in + pack - 1) // pack) * pack
    fan_in = C_in * K * K
    fan_pad = C_pad * K * K
    use_im2col = C_pad < im2col_threshold

    # ConstrainedLayer: y = (conv(x, w) + b) * scale.  Fold the scale into the
    # (tiny) weight & bias once, outside the kernel.
    scale = math.sqrt(2.0 / fan_in) * lr_mul      # getLayerNormalizationFactor * lrMul
    w4 = jnp.transpose(weight_oihw, (0, 2, 3, 1)).astype(jnp.float32) * scale
    if C_pad > C_in:                              # zero columns for channel padding
        w4 = jnp.pad(w4, ((0, 0), (0, 0), (0, 0), (0, C_pad - C_in)))
    w_mat = w4.reshape(C_out, fan_pad).astype(compute_dtype)
    b_col = (bias.astype(jnp.float32) * scale).reshape(C_out, 1)

    # --- generation-aware VMEM budget ----------------------------------------
    capacity = 64 * 1024 * 1024                   # safe for every generation
    try:
        info = pltpu.get_tpu_info()
        capacity = int(getattr(info, "vmem_capacity_bytes", capacity)) or capacity
    except Exception:
        pass

    def est_fn(TH):
        TW_ = TH * W
        return (2 * (C_in * TW_ + 2 * C_in * pad * W) * cs        # x + halos (2-buf)
                + 2 * C_out * TW_ * out_is                        # output (2-buf)
                + 2 * (C_out * fan_pad * cs + C_out * 4)          # weight + bias
                + C_pad * ((TH + 2 * pad) * W + 2 * pad) * cs     # xp scratch
                + (fan_pad * TW_ * cs if use_im2col else 0))      # im2col scratch

    TH = row_tile if row_tile is not None else _choose_row_tile(
        H, W, N, pad, est_fn, budget_bytes=int(0.55 * capacity))
    assert H % TH == 0 and TH >= pad
    assert TH == H or (TH * W) % 128 == 0, "row tile must give a lane-dense output block"
    n_t = H // TH
    TW = TH * W

    x_cast = x_nchw.astype(compute_dtype)
    x_flat = x_cast.reshape(N, C_in, H * W)       # free contiguous reshape

    # Halo rows as tiny side inputs: tile t also needs the `pad` rows directly
    # above/below it.  When TH == H these are all-zero and negligible.
    xr = x_cast.reshape(N, C_in, n_t, TH, W)
    zrow = jnp.zeros((N, C_in, 1, pad, W), dtype=compute_dtype)
    halo_top = jnp.concatenate([zrow, xr[:, :, :n_t - 1, TH - pad:, :]], axis=2)
    halo_bot = jnp.concatenate([xr[:, :, 1:, :pad, :], zrow], axis=2)
    halo_top = halo_top.transpose(0, 2, 1, 3, 4).reshape(N, n_t, C_in, pad * W)
    halo_bot = halo_bot.transpose(0, 2, 1, 3, 4).reshape(N, n_t, C_in, pad * W)

    scratch = [pltpu.VMEM((C_pad, (TH + 2 * pad) * W + 2 * pad), compute_dtype)]
    if use_im2col:
        scratch.append(pltpu.VMEM((fan_pad, TW), compute_dtype))

    kernel = functools.partial(_equalized_conv_kernel, C_in=C_in, C_pad=C_pad,
                               W=W, K=K, TH=TH, use_im2col=use_im2col)

    vmem_limit = int(min(capacity, max(est_fn(TH) + (4 << 20), 16 << 20)))

    out_flat = pl.pallas_call(
        kernel,
        out_shape=jax.ShapeDtypeStruct((N, C_out, H * W), out_dtype),
        grid_spec=pltpu.PrefetchScalarGridSpec(
            num_scalar_prefetch=0,
            grid=(N, n_t),
            in_specs=[
                pl.BlockSpec((None, C_in, TW), lambda n, t: (n, 0, t)),
                pl.BlockSpec((None, None, C_in, pad * W), lambda n, t: (n, t, 0, 0)),
                pl.BlockSpec((None, None, C_in, pad * W), lambda n, t: (n, t, 0, 0)),
                # weight / bias: constant block index -> stays VMEM-resident.
                pl.BlockSpec((C_out, fan_pad), lambda n, t: (0, 0)),
                pl.BlockSpec((C_out, 1), lambda n, t: (0, 0)),
            ],
            out_specs=pl.BlockSpec((None, C_out, TW), lambda n, t: (n, 0, t)),
            scratch_shapes=scratch,
        ),
        compiler_params=pltpu.CompilerParams(
            dimension_semantics=("parallel", "parallel"),
            vmem_limit_bytes=vmem_limit),
    )(x_flat, halo_top, halo_bot, w_mat, b_col)

    return out_flat.reshape(N, C_out, H, W)       # free contiguous unflatten


def _reference(x_nchw, weight_oihw, bias, *, lr_mul=1.0):
    """Plain-JAX f32 reference (lax conv) for a correctness cross-check."""
    C_in = x_nchw.shape[1]
    K = weight_oihw.shape[2]
    scale = math.sqrt(2.0 / (C_in * K * K)) * lr_mul
    y = jax.lax.conv_general_dilated(
        x_nchw, weight_oihw, window_strides=(1, 1), padding="SAME",
        dimension_numbers=("NCHW", "OIHW", "NCHW"))
    return (y + bias.reshape(1, -1, 1, 1)) * scale


if __name__ == "__main__":
    key = jax.random.PRNGKey(0)
    k_x, k_w, k_b = jax.random.split(key, 3)

    N, C_in, C_out, H, W, K = 2, 4, 8, 16, 16, 3
    lr_mul = 1.0

    x = jax.random.normal(k_x, (N, C_in, H, W), dtype=jnp.float32)
    # ConstrainedLayer.__init__: weight ~ N(0,1) / lrMul ; bias = 0
    weight = jax.random.normal(k_w, (C_out, C_in, K, K), dtype=jnp.float32) / lr_mul
    bias0 = jnp.zeros((C_out,), dtype=jnp.float32)
    bias1 = jax.random.normal(k_b, (C_out,), dtype=jnp.float32)

    ref0 = _reference(x, weight, bias0, lr_mul=lr_mul)
    ref1 = _reference(x, weight, bias1, lr_mul=lr_mul)

    # 1) f32 compute, forced multi-row-tile grid -> exercises the halo path.
    f32_fn = jax.jit(functools.partial(constrained_conv2d, lr_mul=lr_mul,
                                       compute_dtype=jnp.float32, row_tile=8))
    out = jax.block_until_ready(f32_fn(x, weight, bias0))
    assert out.shape == (N, C_out, H, W)
    assert jnp.allclose(out, ref0, atol=5e-3, rtol=5e-3), "f32 halo-path mismatch"

    # 2) default bf16 compute (f32 accumulation) with a non-zero bias.
    bf16_fn = jax.jit(functools.partial(constrained_conv2d, lr_mul=lr_mul))
    out = jax.block_until_ready(bf16_fn(x, weight, bias1))
    assert jnp.allclose(out, ref1, atol=1.5e-1, rtol=5e-2), "bf16 path mismatch"

    # 3) per-tap accumulation path (auto-selected when C_in >= 128), forced here.
    tap_fn = jax.jit(functools.partial(constrained_conv2d, lr_mul=lr_mul,
                                       compute_dtype=jnp.float32,
                                       im2col_threshold=0))
    out = jax.block_until_ready(tap_fn(x, weight, bias1))
    assert jnp.allclose(out, ref1, atol=5e-3, rtol=5e-3), "per-tap path mismatch"

    print("KERNEL_OK")
</pallas_src>

<mosaic_0001>
module attributes {stable_mosaic.version = 11 : i64} {
  func.func @_equalized_conv_kernel(%arg0: i32, %arg1: i32, %arg2: memref<1x4x128xf32, #tpu.memory_space<vmem>>, %arg3: memref<1x1x4x16xf32, #tpu.memory_space<vmem>>, %arg4: memref<1x1x4x16xf32, #tpu.memory_space<vmem>>, %arg5: memref<8x72xf32, #tpu.memory_space<vmem>>, %arg6: memref<8x1xf32, #tpu.memory_space<vmem>>, %arg7: memref<1x8x128xf32, #tpu.memory_space<vmem>>, %arg8: memref<8x162xf32, #tpu.memory_space<vmem>>, %arg9: memref<72x128xf32, #tpu.memory_space<vmem>>) attributes {dimension_semantics = [#tpu.dimension_semantics<parallel>, #tpu.dimension_semantics<parallel>], iteration_bounds = array<i64: 2, 2>, scalar_prefetch = 0 : i64, scratch_operands = 2 : i64, tpu.core_type = #tpu.core_type<tc>, window_params = [{transform_indices = @transform_0, window_bounds = array<i64: 1, 4, 128>}, {transform_indices = @transform_1, window_bounds = array<i64: 1, 1, 4, 16>}, {transform_indices = @transform_2, window_bounds = array<i64: 1, 1, 4, 16>}, {pipeline_mode = #tpu.pipeline_mode<synchronous>, transform_indices = @transform_3, window_bounds = array<i64: 8, 72>}, {pipeline_mode = #tpu.pipeline_mode<synchronous>, transform_indices = @transform_4, window_bounds = array<i64: 8, 1>}, {transform_indices = @transform_5, window_bounds = array<i64: 1, 8, 128>}]} {
    %cst = arith.constant 0.000000e+00 : f32
    %0 = vector.broadcast %cst : f32 to vector<8x1xf32>
    %c0 = arith.constant 0 : index
    %c0_0 = arith.constant 0 : index
    %1 = vector.load %arg8[%c0, %c0_0] : memref<8x162xf32, #tpu.memory_space<vmem>>, vector<8x1xf32>
    tpu.vector_store %arg8[%c0, %c0_0], %0 {strides = array<i32>} : memref<8x162xf32, #tpu.memory_space<vmem>>, vector<8x1xf32>,
    %cst_1 = arith.constant 0.000000e+00 : f32
    %2 = vector.broadcast %cst_1 : f32 to vector<8x1xf32>
    %c0_2 = arith.constant 0 : index
    %c161 = arith.constant 161 : index
    %3 = vector.load %arg8[%c0_2, %c161] : memref<8x162xf32, #tpu.memory_space<vmem>>, vector<8x1xf32>
    tpu.vector_store %arg8[%c0_2, %c161], %2 {strides = array<i32>} : memref<8x162xf32, #tpu.memory_space<vmem>>, vector<8x1xf32>,
    %cst_3 = arith.constant 0.000000e+00 : f32
    %4 = vector.broadcast %cst_3 : f32 to vector<4x162xf32>
    %c4 = arith.constant 4 : index
    %c0_4 = arith.constant 0 : index
    %5 = vector.load %arg8[%c4, %c0_4] : memref<8x162xf32, #tpu.memory_space<vmem>>, vector<4x162xf32>
    tpu.vector_store %arg8[%c4, %c0_4], %4 {strides = array<i32>} : memref<8x162xf32, #tpu.memory_space<vmem>>, vector<4x162xf32>,
    %c0_5 = arith.constant 0 : index
    %c0_6 = arith.constant 0 : index
    %c0_7 = arith.constant 0 : index
    %c0_8 = arith.constant 0 : index
    %6 = vector.load %arg3[%c0_5, %c0_6, %c0_7, %c0_8] : memref<1x1x4x16xf32, #tpu.memory_space<vmem>>, vector<1x1x4x16xf32>
    %7 = vector.shape_cast %6 : vector<1x1x4x16xf32> to vector<4x16xf32>
    %c0_9 = arith.constant 0 : index
    %c1 = arith.constant 1 : index
    %8 = vector.load %arg8[%c0_9, %c1] : memref<8x162xf32, #tpu.memory_space<vmem>>, vector<4x16xf32>
    tpu.vector_store %arg8[%c0_9, %c1], %7 {strides = array<i32>} : memref<8x162xf32, #tpu.memory_space<vmem>>, vector<4x16xf32>,
    %c0_10 = arith.constant 0 : index
    %c0_11 = arith.constant 0 : index
    %c0_12 = arith.constant 0 : index
    %9 = vector.load %arg2[%c0_10, %c0_11, %c0_12] : memref<1x4x128xf32, #tpu.memory_space<vmem>>, vector<1x4x128xf32>
    %10 = vector.shape_cast %9 : vector<1x4x128xf32> to vector<4x128xf32>
    %c0_13 = arith.constant 0 : index
    %c17 = arith.constant 17 : index
    %11 = vector.load %arg8[%c0_13, %c17] : memref<8x162xf32, #tpu.memory_space<vmem>>, vector<4x128xf32>
    tpu.vector_store %arg8[%c0_13, %c17], %10 {strides = array<i32>} : memref<8x162xf32, #tpu.memory_space<vmem>>, vector<4x128xf32>,
    %c0_14 = arith.constant 0 : index
    %c0_15 = arith.constant 0 : index
    %c0_16 = arith.constant 0 : index
    %c0_17 = arith.constant 0 : index
    %12 = vector.load %arg4[%c0_14, %c0_15, %c0_16, %c0_17] : memref<1x1x4x16xf32, #tpu.memory_space<vmem>>, vector<1x1x4x16xf32>
    %13 = vector.shape_cast %12 : vector<1x1x4x16xf32> to vector<4x16xf32>
    %c0_18 = arith.constant 0 : index
    %c145 = arith.constant 145 : index
    %14 = vector.load %arg8[%c0_18, %c145] : memref<8x162xf32, #tpu.memory_space<vmem>>, vector<4x16xf32>
    tpu.vector_store %arg8[%c0_18, %c145], %13 {strides = array<i32>} : memref<8x162xf32, #tpu.memory_space<vmem>>, vector<4x16xf32>,
    %15 = tpu.iota {dimensions = array<i32: 1>} : vector<1x128xi32>
    %c16_i32 = arith.constant 16 : i32
    %c0_i32 = arith.constant 0 : i32
    %16 = arith.cmpi eq, %c16_i32, %c0_i32 : i32
    %c1_i32 = arith.constant 1 : i32
    %17 = arith.select %16, %c1_i32, %c16_i32 : i32
    %18 = vector.broadcast %17 : i32 to vector<1x128xi32>
    %19 = arith.remsi %15, %18 : vector<1x128xi32>
    %c0_i32_19 = arith.constant 0 : i32
    %20 = vector.broadcast %c0_i32_19 : i32 to vector<1x128xi32>
    %21 = arith.cmpi ne, %19, %20 : vector<1x128xi32>
    %c0_i32_20 = arith.constant 0 : i32
    %22 = vector.broadcast %c0_i32_20 : i32 to vector<1x128xi32>
    %23 = arith.cmpi slt, %19, %22 : vector<1x128xi32>
    %c0_i32_21 = arith.constant 0 : i32
    %24 = arith.cmpi slt, %17, %c0_i32_21 : i32
    %25 = vector.broadcast %24 : i1 to vector<1x128xi1>
    %26 = vector.broadcast %25 : vector<1x128xi1> to vector<1x128xi1>
    %27 = arith.xori %23, %26 : vector<1x128xi1>
    %28 = arith.andi %27, %21 : vector<1x128xi1>
    %29 = vector.broadcast %17 : i32 to vector<1x128xi32>
    %30 = arith.addi %19, %29 : vector<1x128xi32>
    %31 = arith.select %28, %30, %19 : vector<1x128xi1>, vector<1x128xi32>
    %c1_i32_22 = arith.constant 1 : i32
    %32 = vector.broadcast %c1_i32_22 : i32 to vector<1x128xi32>
    %33 = arith.cmpi sge, %31, %32 : vector<1x128xi32>
    %c15_i32 = arith.constant 15 : i32
    %34 = vector.broadcast %c15_i32 : i32 to vector<1x128xi32>
    %35 = arith.cmpi slt, %31, %34 : vector<1x128xi32>
    %c0_23 = arith.constant 0 : index
    %c0_24 = arith.constant 0 : index
    %36 = vector.load %arg8[%c0_23, %c0_24] : memref<8x162xf32, #tpu.memory_space<vmem>>, vector<8x128xf32>
    %cst_25 = arith.constant 0.000000e+00 : f32
    %37 = vector.broadcast %cst_25 : f32 to vector<8x128xf32>
    %38 = vector.shape_cast %33 : vector<1x128xi1> to vector<1x128xi1>
    %39 = vector.broadcast %38 : vector<1x128xi1> to vector<8x128xi1>
    %40 = arith.select %39, %36, %37 : vector<8x128xi1>, vector<8x128xf32>
    %c0_26 = arith.constant 0 : index
    %c0_27 = arith.constant 0 : index
    %41 = vector.load %arg9[%c0_26, %c0_27] : memref<72x128xf32, #tpu.memory_space<vmem>>, vector<8x128xf32>
    tpu.vector_store %arg9[%c0_26, %c0_27], %40 {strides = array<i32>} : memref<72x128xf32, #tpu.memory_space<vmem>>, vector<8x128xf32>,
    %c0_28 = arith.constant 0 : index
    %c1_29 = arith.constant 1 : index
    %42 = vector.load %arg8[%c0_28, %c1_29] : memref<8x162xf32, #tpu.memory_space<vmem>>, vector<8x128xf32>
    %c8 = arith.constant 8 : index
    %c0_30 = arith.constant 0 : index
    %43 = vector.load %arg9[%c8, %c0_30] : memref<72x128xf32, #tpu.memory_space<vmem>>, vector<8x128xf32>
    tpu.vector_store %arg9[%c8, %c0_30], %42 {strides = array<i32>} : memref<72x128xf32, #tpu.memory_space<vmem>>, vector<8x128xf32>,
    %c0_31 = arith.constant 0 : index
    %c2 = arith.constant 2 : index
    %44 = vector.load %arg8[%c0_31, %c2] : memref<8x162xf32, #tpu.memory_space<vmem>>, vector<8x128xf32>
    %cst_32 = arith.constant 0.000000e+00 : f32
    %45 = vector.broadcast %cst_32 : f32 to vector<8x128xf32>
    %46 = vector.shape_cast %35 : vector<1x128xi1> to vector<1x128xi1>
    %47 = vector.broadcast %46 : vector<1x128xi1> to vector<8x128xi1>
    %48 = arith.select %47, %44, %45 : vector<8x128xi1>, vector<8x128xf32>
    %c16 = arith.constant 16 : index
    %c0_33 = arith.constant 0 : index
    %49 = vector.load %arg9[%c16, %c0_33] : memref<72x128xf32, #tpu.memory_space<vmem>>, vector<8x128xf32>
    tpu.vector_store %arg9[%c16, %c0_33], %48 {strides = array<i32>} : memref<72x128xf32, #tpu.memory_space<vmem>>, vector<8x128xf32>,
    %c0_34 = arith.constant 0 : index
    %c16_35 = arith.constant 16 : index
    %50 = vector.load %arg8[%c0_34, %c16_35] : memref<8x162xf32, #tpu.memory_space<vmem>>, vector<8x128xf32>
    %cst_36 = arith.constant 0.000000e+00 : f32
    %51 = vector.broadcast %cst_36 : f32 to vector<8x128xf32>
    %52 = vector.shape_cast %33 : vector<1x128xi1> to vector<1x128xi1>
    %53 = vector.broadcast %52 : vector<1x128xi1> to vector<8x128xi1>
    %54 = arith.select %53, %50, %51 : vector<8x128xi1>, vector<8x128xf32>
    %c24 = arith.constant 24 : index
    %c0_37 = arith.constant 0 : index
    %55 = vector.load %arg9[%c24, %c0_37] : memref<72x128xf32, #tpu.memory_space<vmem>>, vector<8x128xf32>
    tpu.vector_store %arg9[%c24, %c0_37], %54 {strides = array<i32>} : memref<72x128xf32, #tpu.memory_space<vmem>>, vector<8x128xf32>,
    %c0_38 = arith.constant 0 : index
    %c17_39 = arith.constant 17 : index
    %56 = vector.load %arg8[%c0_38, %c17_39] : memref<8x162xf32, #tpu.memory_space<vmem>>, vector<8x128xf32>
    %c32 = arith.constant 32 : index
    %c0_40 = arith.constant 0 : index
    %57 = vector.load %arg9[%c32, %c0_40] : memref<72x128xf32, #tpu.memory_space<vmem>>, vector<8x128xf32>
    tpu.vector_store %arg9[%c32, %c0_40], %56 {strides = array<i32>} : memref<72x128xf32, #tpu.memory_space<vmem>>, vector<8x128xf32>,
    %c0_41 = arith.constant 0 : index
    %c18 = arith.constant 18 : index
    %58 = vector.load %arg8[%c0_41, %c18] : memref<8x162xf32, #tpu.memory_space<vmem>>, vector<8x128xf32>
    %cst_42 = arith.constant 0.000000e+00 : f32
    %59 = vector.broadcast %cst_42 : f32 to vector<8x128xf32>
    %60 = vector.shape_cast %35 : vector<1x128xi1> to vector<1x128xi1>
    %61 = vector.broadcast %60 : vector<1x128xi1> to vector<8x128xi1>
    %62 = arith.select %61, %58, %59 : vector<8x128xi1>, vector<8x128xf32>
    %c40 = arith.constant 40 : index
    %c0_43 = arith.constant 0 : index
    %63 = vector.load %arg9[%c40, %c0_43] : memref<72x128xf32, #tpu.memory_space<vmem>>, vector<8x128xf32>
    tpu.vector_store %arg9[%c40, %c0_43], %62 {strides = array<i32>} : memref<72x128xf32, #tpu.memory_space<vmem>>, vector<8x128xf32>,
    %c0_44 = arith.constant 0 : index
    %c32_45 = arith.constant 32 : index
    %64 = vector.load %arg8[%c0_44, %c32_45] : memref<8x162xf32, #tpu.memory_space<vmem>>, vector<8x128xf32>
    %cst_46 = arith.constant 0.000000e+00 : f32
    %65 = vector.broadcast %cst_46 : f32 to vector<8x128xf32>
    %66 = vector.shape_cast %33 : vector<1x128xi1> to vector<1x128xi1>
    %67 = vector.broadcast %66 : vector<1x128xi1> to vector<8x128xi1>
    %68 = arith.select %67, %64, %65 : vector<8x128xi1>, vector<8x128xf32>
    %c48 = arith.constant 48 : index
    %c0_47 = arith.constant 0 : index
    %69 = vector.load %arg9[%c48, %c0_47] : memref<72x128xf32, #tpu.memory_space<vmem>>, vector<8x128xf32>
    tpu.vector_store %arg9[%c48, %c0_47], %68 {strides = array<i32>} : memref<72x128xf32, #tpu.memory_space<vmem>>, vector<8x128xf32>,
    %c0_48 = arith.constant 0 : index
    %c33 = arith.constant 33 : index
    %70 = vector.load %arg8[%c0_48, %c33] : memref<8x162xf32, #tpu.memory_space<vmem>>, vector<8x128xf32>
    %c56 = arith.constant 56 : index
    %c0_49 = arith.constant 0 : index
    %71 = vector.load %arg9[%c56, %c0_49] : memref<72x128xf32, #tpu.memory_space<vmem>>, vector<8x128xf32>
    tpu.vector_store %arg9[%c56, %c0_49], %70 {strides = array<i32>} : memref<72x128xf32, #tpu.memory_space<vmem>>, vector<8x128xf32>,
    %c0_50 = arith.constant 0 : index
    %c34 = arith.constant 34 : index
    %72 = vector.load %arg8[%c0_50, %c34] : memref<8x162xf32, #tpu.memory_space<vmem>>, vector<8x128xf32>
    %cst_51 = arith.constant 0.000000e+00 : f32
    %73 = vector.broadcast %cst_51 : f32 to vector<8x128xf32>
    %74 = vector.shape_cast %35 : vector<1x128xi1> to vector<1x128xi1>
    %75 = vector.broadcast %74 : vector<1x128xi1> to vector<8x128xi1>
    %76 = arith.select %75, %72, %73 : vector<8x128xi1>, vector<8x128xf32>
    %c64 = arith.constant 64 : index
    %c0_52 = arith.constant 0 : index
    %77 = vector.load %arg9[%c64, %c0_52] : memref<72x128xf32, #tpu.memory_space<vmem>>, vector<8x128xf32>
    tpu.vector_store %arg9[%c64, %c0_52], %76 {strides = array<i32>} : memref<72x128xf32, #tpu.memory_space<vmem>>, vector<8x128xf32>,
    %c0_53 = arith.constant 0 : index
    %c0_54 = arith.constant 0 : index
    %78 = vector.load %arg5[%c0_53, %c0_54] : memref<8x72xf32, #tpu.memory_space<vmem>>, vector<8x72xf32>
    %c0_55 = arith.constant 0 : index
    %c0_56 = arith.constant 0 : index
    %79 = vector.load %arg9[%c0_55, %c0_56] : memref<72x128xf32, #tpu.memory_space<vmem>>, vector<72x128xf32>
    %cst_57 = arith.constant dense<0.000000e+00> : vector<8x128xf32>
    %80 = tpu.matmul %78, %79, %cst_57 {dimension_numbers = #tpu.dot_dimension_numbers<[1], [0], [0], [1], [0, 0, 1, 1], [], []>} : vector<8x72xf32>, vector<72x128xf32>, vector<8x128xf32> -> vector<8x128xf32>
    %c0_58 = arith.constant 0 : index
    %c0_59 = arith.constant 0 : index
    %81 = vector.load %arg6[%c0_58, %c0_59] : memref<8x1xf32, #tpu.memory_space<vmem>>, vector<8x1xf32>
    %82 = vector.broadcast %81 : vector<8x1xf32> to vector<8x128xf32>
    %83 = arith.addf %80, %82 : vector<8x128xf32>
    %c0_60 = arith.constant 0 : index
    %c0_61 = arith.constant 0 : index
    %c0_62 = arith.constant 0 : index
    %84 = vector.load %arg7[%c0_60, %c0_61, %c0_62] : memref<1x8x128xf32, #tpu.memory_space<vmem>>, vector<1x8x128xf32>
    %85 = vector.shape_cast %84 : vector<1x8x128xf32> to vector<8x128xf32>
    %86 = vector.shape_cast %83 : vector<8x128xf32> to vector<1x8x128xf32>
    tpu.vector_store %arg7[%c0_60, %c0_61, %c0_62], %86 {strides = array<i32>} : memref<1x8x128xf32, #tpu.memory_space<vmem>>, vector<1x8x128xf32>,
    return
  }
  func.func @transform_0(%arg0: i32, %arg1: i32) -> (i32, i32, i32) {
    %c0_i32 = arith.constant 0 : i32
    %c0_i32_0 = arith.constant 0 : i32
    return %arg0, %c0_i32, %arg1 : i32, i32, i32
  }
  func.func @transform_1(%arg0: i32, %arg1: i32) -> (i32, i32, i32, i32) {
    %c0_i32 = arith.constant 0 : i32
    %c0_i32_0 = arith.constant 0 : i32
    %c0_i32_1 = arith.constant 0 : i32
    return %arg0, %arg1, %c0_i32, %c0_i32_0 : i32, i32, i32, i32
  }
  func.func @transform_2(%arg0: i32, %arg1: i32) -> (i32, i32, i32, i32) {
    %c0_i32 = arith.constant 0 : i32
    %c0_i32_0 = arith.constant 0 : i32
    %c0_i32_1 = arith.constant 0 : i32
    return %arg0, %arg1, %c0_i32, %c0_i32_0 : i32, i32, i32, i32
  }
  func.func @transform_3(%arg0: i32, %arg1: i32) -> (i32, i32) {
    %c0_i32 = arith.constant 0 : i32
    %c0_i32_0 = arith.constant 0 : i32
    %c0_i32_1 = arith.constant 0 : i32
    return %c0_i32, %c0_i32_0 : i32, i32
  }
  func.func @transform_4(%arg0: i32, %arg1: i32) -> (i32, i32) {
    %c0_i32 = arith.constant 0 : i32
    %c0_i32_0 = arith.constant 0 : i32
    %c0_i32_1 = arith.constant 0 : i32
    return %c0_i32, %c0_i32_0 : i32, i32
  }
  func.func @transform_5(%arg0: i32, %arg1: i32) -> (i32, i32, i32) {
    %c0_i32 = arith.constant 0 : i32
    %c0_i32_0 = arith.constant 0 : i32
    return %arg0, %c0_i32, %arg1 : i32, i32, i32
  }
}

</mosaic_0001>

<llo_original>
// kernel: constrained_conv2d.1
$region0: #{constrained_conv2d.1}
  #allocation0 [shape = 'u32[]', space=smem, size = 0x4, offset = 0x4, fixed_abs, tag = 'smem constant byte address 0x4 - core index']
  #allocation1 [shape = 'u32[72,128]{1,0:T(1,128)}', space=vmem, size = 0x9000, scoped, tag = 'internal scratch']
  #allocation2 [shape = 'f32[8,162]{1,0:T(8,128)}', space=vmem, size = 0x2000, scoped, tag = 'scratch operand']
  #allocation3 [shape = 'f32[72,128]{1,0:T(8,128)}', space=vmem, size = 0x9000, scoped, tag = 'scratch operand']
  %s0 = inlined_call_operand.vmem [shape: f32[2,4,256], index: 0, kind: input, shape index: {}]
  %s1 = inlined_call_operand.vmem [shape: f32[2,2,4,16], index: 1, kind: input, shape index: {}]
  %s2 = inlined_call_operand.vmem [shape: f32[2,2,4,16], index: 2, kind: input, shape index: {}]
  %s3 = inlined_call_operand.vmem [shape: f32[8,72], index: 3, kind: input, shape index: {}]
  %s4 = inlined_call_operand.vmem [shape: f32[8,1], index: 4, kind: input, shape index: {}]
  %s5 = inlined_call_operand.vmem [shape: f32[2,8,256], index: 5, kind: output, shape index: {}]
  %s6 = sld [smem:[#allocation0]]
  $region53: #{constrained_conv2d.1} parent=0
    _
  %s8 = ssub.s32 1, %s6
  %s9 = scalar_select 0, %s8, %s6
  loop: start=0, step=1, limit=6
  $region2: #{constrained_conv2d.1} parent=0 // loop_pre_header
    _
  $region3: #{constrained_conv2d.1} parent=0 // loop_header
    %s11 = sphi 0, %s15
    %p12 = scmp.ge.s32.totalorder %s11, 6
    %s18 = sphi 0, %s30
    %s19 = sphi 0, %s26
    %s20 = sphi 0, %s18
    %s21 = sphi 0, %s19
    %s22 = sphi 0, %s20
    %s23 = sphi 0, %s21
    %s35 = sphi 0, %s37
    %s38 = sphi 0, %s35
    %s39 = sphi 0, %s38
    %s55 = sphi 0, %s39
    %s63 = sphi 0, %s65
    %s66 = sphi 0, %s63
    %s67 = sphi 0, %s66
    %s83 = sphi 0, %s67
    %s91 = sphi 0, %s93
    %s94 = sphi 0, %s91
    %s95 = sphi 0, %s94
    %s111 = sphi 0, %s95
    %s115 = sphi 0, %s115
    %s117 = sphi 0, %s115
    %s118 = sphi 0, %s117
    %s132 = sphi 0, %s118
    %s136 = sphi 0, %s136
    %s138 = sphi 0, %s136
    %s139 = sphi 0, %s138
    %s153 = sphi 0, %s139
    %s161 = sphi 0, %s163
    %s164 = sphi 0, %s161
    %s165 = sphi 0, %s164
    %s181 = sphi 0, %s165
  $region4: #{constrained_conv2d.1} parent=0 // loop_header_branch
    %14 = sbr.rel (%p12) target = $region8
  $region5: #{constrained_conv2d.1} parent=0 // loop_body
    %s16 = ssub.s32 %s11, 1
    %s17 = ssub.s32 %s11, 2
    %s24 = sadd.s32 1, %s19
    %p25 = scmp.ge.s32.totalorder %s24, 2
    %s26 = scalar_select %p25, 0, %s24
    %s27 = sadd.s32 1, %s18
    %s28 = scalar_select %p25, %s27, %s18
    %p29 = scmp.ge.s32.totalorder %s28, 2
    %s30 = scalar_select %p29, 0, %s28
    %s31 = ssub.s32 %s18, %s30
    %s32 = ssub.s32 %s19, %s26
    %s33 = sor.u32 %s31, %s32
    %p34 = scmp.eq.s32.totalorder %s33, 0
    %s36 = sadd.s32 %s35, 1
    %s37 = scalar_select %p34, %s35, %s36
    %p40 = pneg %p34
    %p41 = scmp.eq.s32.totalorder %s11, 3
    %p42 = por %p40, %p41
    %p43 = scmp.ne.s32.totalorder %s35, %s38
    %p44 = scmp.eq.s32.totalorder %s11, 0
    %p45 = por %p43, %p44
    %p46 = scmp.ne.s32.totalorder %s35, %s38
    %p47 = scmp.eq.s32.totalorder %s16, 3
    %p48 = por %p46, %p47
    %p49 = scmp.ne.s32.totalorder %s38, %s39
    %p50 = scmp.eq.s32.totalorder %s16, 0
    %p51 = por %p49, %p50
    %p52 = scmp.ne.s32.totalorder %s38, %s39
    %p53 = scmp.eq.s32.totalorder %s17, 3
    %p54 = por %p52, %p53
    %p56 = scmp.ne.s32.totalorder %s39, %s55
    %p57 = scmp.eq.s32.totalorder %s17, 0
    %p58 = por %p56, %p57
    %s59 = ssub.s32 %s18, %s30
    %s60 = ssub.s32 %s19, %s26
    %s61 = sor.u32 %s59, %s60
    %p62 = scmp.eq.s32.totalorder %s61, 0
    %s64 = sadd.s32 %s63, 1
    %s65 = scalar_select %p62, %s63, %s64
    %p68 = pneg %p62
    %p69 = scmp.eq.s32.totalorder %s11, 3
    %p70 = por %p68, %p69
    %p71 = scmp.ne.s32.totalorder %s63, %s66
    %p72 = scmp.eq.s32.totalorder %s11, 0
    %p73 = por %p71, %p72
    %p74 = scmp.ne.s32.totalorder %s63, %s66
    %p75 = scmp.eq.s32.totalorder %s16, 3
    %p76 = por %p74, %p75
    %p77 = scmp.ne.s32.totalorder %s66, %s67
    %p78 = scmp.eq.s32.totalorder %s16, 0
    %p79 = por %p77, %p78
    %p80 = scmp.ne.s32.totalorder %s66, %s67
    %p81 = scmp.eq.s32.totalorder %s17, 3
    %p82 = por %p80, %p81
    %p84 = scmp.ne.s32.totalorder %s67, %s83
    %p85 = scmp.eq.s32.totalorder %s17, 0
    %p86 = por %p84, %p85
    %s87 = ssub.s32 %s18, %s30
    %s88 = ssub.s32 %s19, %s26
    %s89 = sor.u32 %s87, %s88
    %p90 = scmp.eq.s32.totalorder %s89, 0
    %s92 = sadd.s32 %s91, 1
    %s93 = scalar_select %p90, %s91, %s92
    %p96 = pneg %p90
    %p97 = scmp.eq.s32.totalorder %s11, 3
    %p98 = por %p96, %p97
    %p99 = scmp.ne.s32.totalorder %s91, %s94
    %p100 = scmp.eq.s32.totalorder %s11, 0
    %p101 = por %p99, %p100
    %p102 = scmp.ne.s32.totalorder %s91, %s94
    %p103 = scmp.eq.s32.totalorder %s16, 3
    %p104 = por %p102, %p103
    %p105 = scmp.ne.s32.totalorder %s94, %s95
    %p106 = scmp.eq.s32.totalorder %s16, 0
    %p107 = por %p105, %p106
    %p108 = scmp.ne.s32.totalorder %s94, %s95
    %p109 = scmp.eq.s32.totalorder %s17, 3
    %p110 = por %p108, %p109
    %p112 = scmp.ne.s32.totalorder %s95, %s111
    %p113 = scmp.eq.s32.totalorder %s17, 0
    %p114 = por %p112, %p113
    %s116 = sadd.s32 %s115, 1
    %p119 = scmp.eq.s32.totalorder %s11, 3
    %p120 = scmp.ne.s32.totalorder %s115, %s117
    %p121 = scmp.eq.s32.totalorder %s11, 0
    %p122 = por %p120, %p121
    %p123 = scmp.ne.s32.totalorder %s115, %s117
    %p124 = scmp.eq.s32.totalorder %s16, 3
    %p125 = por %p123, %p124
    %p126 = scmp.ne.s32.totalorder %s117, %s118
    %p127 = scmp.eq.s32.totalorder %s16, 0
    %p128 = por %p126, %p127
    %p129 = scmp.ne.s32.totalorder %s117, %s118
    %p130 = scmp.eq.s32.totalorder %s17, 3
    %p131 = por %p129, %p130
    %p133 = scmp.ne.s32.totalorder %s118, %s132
    %p134 = scmp.eq.s32.totalorder %s17, 0
    %p135 = por %p133, %p134
    %s137 = sadd.s32 %s136, 1
    %p140 = scmp.eq.s32.totalorder %s11, 3
    %p141 = scmp.ne.s32.totalorder %s136, %s138
    %p142 = scmp.eq.s32.totalorder %s11, 0
    %p143 = por %p141, %p142
    %p144 = scmp.ne.s32.totalorder %s136, %s138
    %p145 = scmp.eq.s32.totalorder %s16, 3
    %p146 = por %p144, %p145
    %p147 = scmp.ne.s32.totalorder %s138, %s139
    %p148 = scmp.eq.s32.totalorder %s16, 0
    %p149 = por %p147, %p148
    %p150 = scmp.ne.s32.totalorder %s138, %s139
    %p151 = scmp.eq.s32.totalorder %s17, 3
    %p152 = por %p150, %p151
    %p154 = scmp.ne.s32.totalorder %s139, %s153
    %p155 = scmp.eq.s32.totalorder %s17, 0
    %p156 = por %p154, %p155
    %s157 = ssub.s32 %s18, %s30
    %s158 = ssub.s32 %s19, %s26
    %s159 = sor.u32 %s157, %s158
    %p160 = scmp.eq.s32.totalorder %s159, 0
    %s162 = sadd.s32 %s161, 1
    %s163 = scalar_select %p160, %s161, %s162
    %p166 = pneg %p160
    %p167 = scmp.eq.s32.totalorder %s11, 3
    %p168 = por %p166, %p167
    %p169 = scmp.ne.s32.totalorder %s161, %s164
    %p170 = scmp.eq.s32.totalorder %s11, 0
    %p171 = por %p169, %p170
    %p172 = scmp.ne.s32.totalorder %s161, %s164
    %p173 = scmp.eq.s32.totalorder %s16, 3
    %p174 = por %p172, %p173
    %p175 = scmp.ne.s32.totalorder %s164, %s165
    %p176 = scmp.eq.s32.totalorder %s16, 0
    %p177 = por %p175, %p176
    %p178 = scmp.ne.s32.totalorder %s164, %s165
    %p179 = scmp.eq.s32.totalorder %s17, 3
    %p180 = por %p178, %p179
    %p182 = scmp.ne.s32.totalorder %s165, %s181
    %p183 = scmp.eq.s32.totalorder %s17, 0
    %p184 = por %p182, %p183
    %p185 = scmp.le.s32.totalorder 1, %s11
    %p186 = scmp.lt.s32.totalorder %s11, 5
    %p187 = pnand %p185, %p186
    %p188 = pneg %p187
    // Predicated region
    $region9: #{constrained_conv2d.1} parent=5 // pred_check
      _
    $region10: #{constrained_conv2d.1} parent=5 // pred_check_branch
      %190 = sbr.rel (%p187) target = $region12
    $region11: #{constrained_conv2d.1} parent=5 // pred_region
      %s191 = ssub.s32 %s11, 1
      // Predicated region
      $region13: #{constrained_conv2d.1} parent=11 // pred_check
        %p192 = pneg %p128
      $region14: #{constrained_conv2d.1} parent=11 // pred_check_branch
        %194 = sbr.rel (%p192) target = $region16
      $region15: #{constrained_conv2d.1} parent=11 // pred_region
        _
      $region16: #{constrained_conv2d.1} parent=11 // pred_fallthru
        _
      // Predicated region
      $region17: #{constrained_conv2d.1} parent=11 // pred_check
        %p195 = pneg %p149
      $region18: #{constrained_conv2d.1} parent=11 // pred_check_branch
        %197 = sbr.rel (%p195) target = $region20
      $region19: #{constrained_conv2d.1} parent=11 // pred_region
        _
      $region20: #{constrained_conv2d.1} parent=11 // pred_fallthru
        _
    $region12: #{constrained_conv2d.1} parent=5 // pred_fallthru
      _
    %p198 = scmp.lt.s32.totalorder %s11, 4
    // Predicated region
    $region21: #{constrained_conv2d.1} parent=5 // pred_check
      %p199 = pneg %p198
    $region22: #{constrained_conv2d.1} parent=5 // pred_check_branch
      %201 = sbr.rel (%p199) target = $region24
    $region23: #{constrained_conv2d.1} parent=5 // pred_region
      // Predicated region
      $region25: #{constrained_conv2d.1} parent=23 // pred_check
        %p202 = pneg %p45
      $region26: #{constrained_conv2d.1} parent=23 // pred_check_branch
        %204 = sbr.rel (%p202) target = $region28
      $region27: #{constrained_conv2d.1} parent=23 // pred_region
        %p205 = scmp.lt.s32.totalorder %s18, 1
        %s206 = scalar_select %p205, %s18, 1
        %p207 = scmp.lt.s32.totalorder %s19, 1
        %s208 = scalar_select %p207, %s19, 1
        %s209 = smul.addr %s206, 2
        %s210 = sadd.s32 %s208, %s209
        %s211 = smul.addr %s210, 4
        %s212 = scalar_lea.vmem %s0, %s211
      $region28: #{constrained_conv2d.1} parent=23 // pred_fallthru
        _
      // Predicated region
      $region29: #{constrained_conv2d.1} parent=23 // pred_check
        %p213 = pneg %p73
      $region30: #{constrained_conv2d.1} parent=23 // pred_check_branch
        %215 = sbr.rel (%p213) target = $region32
      $region31: #{constrained_conv2d.1} parent=23 // pred_region
        %p216 = scmp.lt.s32.totalorder %s18, 1
        %s217 = scalar_select %p216, %s18, 1
        %p218 = scmp.lt.s32.totalorder %s19, 1
        %s219 = scalar_select %p218, %s19, 1
        %s220 = smul.addr %s217, 2
        %s221 = sadd.s32 %s219, %s220
        %s222 = smul.addr %s221, 4
        %s223 = scalar_lea.vmem %s1, %s222
      $region32: #{constrained_conv2d.1} parent=23 // pred_fallthru
        _
      // Predicated region
      $region33: #{constrained_conv2d.1} parent=23 // pred_check
        %p224 = pneg %p101
      $region34: #{constrained_conv2d.1} parent=23 // pred_check_branch
        %226 = sbr.rel (%p224) target = $region36
      $region35: #{constrained_conv2d.1} parent=23 // pred_region
        %p227 = scmp.lt.s32.totalorder %s18, 1
        %s228 = scalar_select %p227, %s18, 1
        %p229 = scmp.lt.s32.totalorder %s19, 1
        %s230 = scalar_select %p229, %s19, 1
        %s231 = smul.addr %s228, 2
        %s232 = sadd.s32 %s230, %s231
        %s233 = smul.addr %s232, 4
        %s234 = scalar_lea.vmem %s2, %s233
      $region36: #{constrained_conv2d.1} parent=23 // pred_fallthru
        _
    $region24: #{constrained_conv2d.1} parent=5 // pred_fallthru
      _
    %p235 = scmp.le.s32.totalorder 1, %s11
    %p236 = scmp.lt.s32.totalorder %s11, 5
    %p237 = pnand %p235, %p236
    %p238 = pneg %p237
    // Predicated region
    $region37: #{constrained_conv2d.1} parent=5 // pred_check
      _
    $region38: #{constrained_conv2d.1} parent=5 // pred_check_branch
      %240 = sbr.rel (%p237) target = $region40
    $region39: #{constrained_conv2d.1} parent=5 // pred_region
      %s241 = ssub.s32 %s11, 1
      %p242 = scmp.lt.s32.totalorder %s20, 1
      %s243 = scalar_select %p242, %s20, 1
      %p244 = scmp.lt.s32.totalorder %s21, 1
      %s245 = scalar_select %p244, %s21, 1
      %s246 = smul.addr %s243, 2
      %s247 = sadd.s32 %s245, %s246
      %s248 = smul.addr %s247, 4
      %s249 = scalar_lea.vmem %s0, %s248
      %p250 = pneg %p51
      %p251 = pneg %p48
      %p252 = scmp.lt.s32.totalorder %s20, 1
      %s253 = scalar_select %p252, %s20, 1
      %p254 = scmp.lt.s32.totalorder %s21, 1
      %s255 = scalar_select %p254, %s21, 1
      %s256 = smul.addr %s253, 2
      %s257 = sadd.s32 %s255, %s256
      %s258 = smul.addr %s257, 4
      %s259 = scalar_lea.vmem %s1, %s258
      %p260 = pneg %p79
      %p261 = pneg %p76
      %p262 = scmp.lt.s32.totalorder %s20, 1
      %s263 = scalar_select %p262, %s20, 1
      %p264 = scmp.lt.s32.totalorder %s21, 1
      %s265 = scalar_select %p264, %s21, 1
      %s266 = smul.addr %s263, 2
      %s267 = sadd.s32 %s265, %s266
      %s268 = smul.addr %s267, 4
      %s269 = scalar_lea.vmem %s2, %s268
      %p270 = pneg %p107
      %p271 = pneg %p104
      %p272 = pneg %p128
      %p273 = pneg %p125
      %p274 = pneg %p149
      %p275 = pneg %p146
      %p276 = pneg %p177
      %p277 = pneg %p174
      %p278 = scmp.lt.s32.totalorder %s20, 1
      %s279 = scalar_select %p278, %s20, 1
      %p280 = scmp.lt.s32.totalorder %s21, 1
      %s281 = scalar_select %p280, %s21, 1
      %s282 = smul.addr %s279, 2
      %s283 = sadd.s32 %s281, %s282
      %s284 = smul.addr %s283, 8
      %s285 = scalar_lea.vmem %s5, %s284
      %p286 = scmp.lt.s32.totalorder %s20, 1
      %s287 = scalar_select %p286, %s20, 1
      %p288 = scmp.lt.s32.totalorder %s21, 1
      %s289 = scalar_select %p288, %s21, 1
      %s290 = smul.addr %s287, 2
      %s291 = sadd.s32 %s289, %s290
      %s292 = smul.addr %s291, 4
      %s293 = scalar_lea.vmem %s0, %s292
      %p294 = scmp.lt.s32.totalorder %s20, 1
      %s295 = scalar_select %p294, %s20, 1
      %p296 = scmp.lt.s32.totalorder %s21, 1
      %s297 = scalar_select %p296, %s21, 1
      %s298 = smul.addr %s295, 2
      %s299 = sadd.s32 %s297, %s298
      %s300 = smul.addr %s299, 4
      %s301 = scalar_lea.vmem %s1, %s300
      %p302 = scmp.lt.s32.totalorder %s20, 1
      %s303 = scalar_select %p302, %s20, 1
      %p304 = scmp.lt.s32.totalorder %s21, 1
      %s305 = scalar_select %p304, %s21, 1
      %s306 = smul.addr %s303, 2
      %s307 = sadd.s32 %s305, %s306
      %s308 = smul.addr %s307, 4
      %s309 = scalar_lea.vmem %s2, %s308
      %p310 = scmp.lt.s32.totalorder %s20, 1
      %s311 = scalar_select %p310, %s20, 1
      %p312 = scmp.lt.s32.totalorder %s21, 1
      %s313 = scalar_select %p312, %s21, 1
      %s314 = smul.addr %s311, 2
      %s315 = sadd.s32 %s313, %s314
      %s316 = smul.addr %s315, 8
      %s317 = scalar_lea.vmem %s5, %s316
      %vm318 = vcmask 7168
      %319 = vst.msk [vmem:[#allocation2] sm:$0xff] %vm318, 0.0
      %vm320 = vcmask 277768
      %321 = vst.msk [vmem:[#allocation2 + $0x8] sm:$0xff] %vm320, 0.0
      %322 = vst [vmem:[#allocation2] sm:$0xf0] 0.0
      %vm323 = vcmask 277508
      %324 = vst.msk [vmem:[#allocation2 + $0x8] sm:$0xf0] %vm323, 0.0
      %v325 = vld [vmem:[%s301] sm:$0xf]
      %327 = vrot.lane.b32.xlu0 %v325, 1
      %v328 = vpop.permute.xlu0 %327
      %vm330 = vcmask 134152
      %331 = vst.msk [vmem:[#allocation2] sm:$0xf] %vm330, %v328
      %v332 = vld [vmem:[%s293] sm:$0xf]
      %334 = vrot.lane.b32.xlu0 %v332, 17
      %v335 = vpop.permute.xlu0 %334
      %vm337 = vcmask 1043592
      %338 = vst.msk [vmem:[#allocation2] sm:$0xf] %vm337, %v335
      %vm339 = vcmask 134144
      %340 = vst.msk [vmem:[#allocation2 + $0x8] sm:$0xf] %vm339, %v335
      %v341 = vld [vmem:[%s309] sm:$0xf]
      %343 = vrot.lane.b32.xlu0 %v341, 17
      %v344 = vpop.permute.xlu0 %343
      %vm346 = vcmask 265352
      %347 = vst.msk [vmem:[#allocation2 + $0x8] sm:$0xf] %vm346, %v344
      %v348 = vlaneseq
      %v349 = vand.u32 %v348, 127
      %vm350 = vcmp.lt.s32.totalorder %v349, 0
      %v351 = vsub.s32 0, %v349
      %v352 = vsel %vm350, %v351, %v349
      %v353 = vshrl.u32 %v352, 4
      %v354 = vand.u32 %v352, 15
      %v355 = vsub.s32 0, %v354
      %v356 = vsel %vm350, %v355, %v354
      %vm357 = vcmp.ne.s32.totalorder %v356, 0
      %vm358 = vcmp.lt.s32.totalorder %v356, 0
      %vm359 = vmand %vm358, %vm357
      %v360 = vadd.s32 %v356, 16
      %v361 = vsel %vm359, %v360, %v356
      %vm362 = vcmp.ge.s32.totalorder %v361, 1
      %vm363 = vcmp.lt.s32.totalorder %v361, 15
      %v364 = vld [vmem:[#allocation2] sm:$0xff]
      %v365 = vsel %vm362, 1, 0
      %vm366 = vcmp.eq.s32.totalorder %v365, 1
      %v367 = vsel %vm366, %v364, 0.0
      %368 = vst [vmem:[#allocation3] sm:$0xff] %v367
      %v369 = vld [vmem:[#allocation2] sm:$0xff]
      %v370 = vld [vmem:[#allocation2 + $0x8] sm:$0xff]
      %373 = vrot.lane.b32.xlu0 %v369, 127
      %v374 = vpop.permute.xlu0 %373
      %375 = vrot.lane.b32.xlu0 %v370, 127
      %v376 = vpop.permute.xlu0 %375
      %vm377 = vcmask 1039360
      %v378 = vsel %vm377, %v374, %v376
      %380 = vst [vmem:[#allocation3 + $0x8] sm:$0xff] %v378
      %v381 = vld [vmem:[#allocation2] sm:$0xff]
      %v382 = vld [vmem:[#allocation2 + $0x8] sm:$0xff]
      %v383 = vsel %vm363, 1, 0
      %vm384 = vcmp.eq.s32.totalorder %v383, 1
      %387 = vrot.lane.b32.xlu0 %v381, 126
      %v388 = vpop.permute.xlu0 %387
      %389 = vrot.lane.b32.xlu0 %v382, 126
      %v390 = vpop.permute.xlu0 %389
      %vm391 = vcmask 1031168
      %v392 = vsel %vm391, %v388, %v390
      %v394 = vsel %vm384, %v392, 0.0
      %395 = vst [vmem:[#allocation3 + $0x10] sm:$0xff] %v394
      %v396 = vld [vmem:[#allocation2] sm:$0xff]
      %v397 = vld [vmem:[#allocation2 + $0x8] sm:$0xff]
      %400 = vrot.lane.b32.xlu0 %v396, 112
      %v401 = vpop.permute.xlu0 %400
      %402 = vrot.lane.b32.xlu0 %v397, 112
      %v403 = vpop.permute.xlu0 %402
      %vm404 = vcmask 916480
      %v405 = vsel %vm404, %v401, %v403
      %v407 = vsel %vm366, %v405, 0.0
      %408 = vst [vmem:[#allocation3 + $0x18] sm:$0xff] %v407
      %v409 = vld [vmem:[#allocation2] sm:$0xff]
      %v410 = vld [vmem:[#allocation2 + $0x8] sm:$0xff]
      %413 = vrot.lane.b32.xlu0 %v409, 111
      %v414 = vpop.permute.xlu0 %413
      %415 = vrot.lane.b32.xlu0 %v410, 111
      %v416 = vpop.permute.xlu0 %415
      %vm417 = vcmask 908288
      %v418 = vsel %vm417, %v414, %v416
      %420 = vst [vmem:[#allocation3 + $0x20] sm:$0xff] %v418
      %v421 = vld [vmem:[#allocation2] sm:$0xff]
      %v422 = vld [vmem:[#allocation2 + $0x8] sm:$0xff]
      %425 = vrot.lane.b32.xlu0 %v421, 110
      %v426 = vpop.permute.xlu0 %425
      %427 = vrot.lane.b32.xlu0 %v422, 110
      %v428 = vpop.permute.xlu0 %427
      %vm429 = vcmask 900096
      %v430 = vsel %vm429, %v426, %v428
      %v432 = vsel %vm384, %v430, 0.0
      %433 = vst [vmem:[#allocation3 + $0x28] sm:$0xff] %v432
      %v434 = vld [vmem:[#allocation2] sm:$0xff]
      %v435 = vld [vmem:[#allocation2 + $0x8] sm:$0xff]
      %438 = vrot.lane.b32.xlu0 %v434, 96
      %v439 = vpop.permute.xlu0 %438
      %440 = vrot.lane.b32.xlu0 %v435, 96
      %v441 = vpop.permute.xlu0 %440
      %vm442 = vcmask 785408
      %v443 = vsel %vm442, %v439, %v441
      %v445 = vsel %vm366, %v443, 0.0
      %446 = vst [vmem:[#allocation3 + $0x30] sm:$0xff] %v445
      %v447 = vld [vmem:[#allocation2] sm:$0xff]
      %v448 = vld [vmem:[#allocation2 + $0x8] sm:$0xff]
      %451 = vrot.lane.b32.xlu0 %v447, 95
      %v452 = vpop.permute.xlu0 %451
      %453 = vrot.lane.b32.xlu0 %v448, 95
      %v454 = vpop.permute.xlu0 %453
      %vm455 = vcmask 777216
      %v456 = vsel %vm455, %v452, %v454
      %458 = vst [vmem:[#allocation3 + $0x38] sm:$0xff] %v456
      %v459 = vld [vmem:[#allocation2] sm:$0xff]
      %v460 = vld [vmem:[#allocation2 + $0x8] sm:$0xff]
      %463 = vrot.lane.b32.xlu0 %v459, 94
      %v464 = vpop.permute.xlu0 %463
      %465 = vrot.lane.b32.xlu0 %v460, 94
      %v466 = vpop.permute.xlu0 %465
      %vm467 = vcmask 769024
      %v468 = vsel %vm467, %v464, %v466
      %v470 = vsel %vm384, %v468, 0.0
      %471 = vst [vmem:[#allocation3 + $0x40] sm:$0xff] %v470
      %v472 = vld [vmem:[%s3] sm:$0xff]
      %v473 = vld [vmem:[#allocation3] sm:$0xff]
      %v474 = vld [vmem:[#allocation3 + $0x8] sm:$0xff]
      %v475 = vld [vmem:[#allocation3 + $0x10] sm:$0xff]
      %v476 = vld [vmem:[#allocation3 + $0x18] sm:$0xff]
      %v477 = vld [vmem:[#allocation3 + $0x20] sm:$0xff]
      %v478 = vld [vmem:[#allocation3 + $0x28] sm:$0xff]
      %v479 = vld [vmem:[#allocation3 + $0x30] sm:$0xff]
      %v480 = vld [vmem:[#allocation3 + $0x38] sm:$0xff]
      %v481 = vld [vmem:[#allocation3 + $0x40] sm:$0xff]
      %v482 = vld [vmem:[%s4] sm:$0xff]
      %484 = vset.pattern.permute.xlu0 0
      %485 = vperm.xlu0 %484, %v482
      %v486 = vpop.permute.xlu0 %485
      %vm488 = vcmask 588800
      %v490 = vsel %vm488, %v472, 0
      %492 = vmatpush.msra.mxu0 0.0
      %493 = vmatpush.msra.mxu0 0.0
      %494 = vmatpush.msra.mxu0 0.0
      %495 = vmatpush.msra.mxu0 0.0
      %496 = vmatpush.msra.mxu0 0.0
      %497 = vmatpush.msra.mxu0 0.0
      %498 = vmatpush.msra.mxu0 0.0
      %499 = vmatpush.msra.mxu0 %v481
      %500 = vmatpush.msra.mxu0 %v480
      %501 = vmatpush.msra.mxu0 %v479
      %502 = vmatpush.msra.mxu0 %v478
      %503 = vmatpush.msra.mxu0 %v477
      %504 = vmatpush.msra.mxu0 %v476
      %505 = vmatpush.msra.mxu0 %v475
      %506 = vmatpush.msra.mxu0 %v474
      %507 = vmatpush.msra.mxu0 %v473
      %508 = vmatmul.f32.gmra.mxu0 %v490
      %v509 = vpop.f32.mrf.mxu0
      %v510 = vadd.f32 %v486, %v509
      %511 = vdwg.mxu0
      %512 = vst [vmem:[%s317] sm:$0xff] %v510
      %p513 = scmp.lt.s32.totalorder %s20, 1
      %s514 = scalar_select %p513, %s20, 1
      %p515 = scmp.lt.s32.totalorder %s21, 1
      %s516 = scalar_select %p515, %s21, 1
      %s517 = smul.addr %s514, 2
      %s518 = sadd.s32 %s516, %s517
      %s519 = smul.addr %s518, 8
      %s520 = scalar_lea.vmem %s5, %s519
      // Predicated region
      $region41: #{constrained_conv2d.1} parent=39 // pred_check
        %p521 = pneg %p174
      $region42: #{constrained_conv2d.1} parent=39 // pred_check_branch
        %523 = sbr.rel (%p521) target = $region44
      $region43: #{constrained_conv2d.1} parent=39 // pred_region
        _
      $region44: #{constrained_conv2d.1} parent=39 // pred_fallthru
        _
    $region40: #{constrained_conv2d.1} parent=5 // pred_fallthru
      _
    %p524 = scmp.le.s32.totalorder 2, %s11
    // Predicated region
    $region45: #{constrained_conv2d.1} parent=5 // pred_check
      %p525 = pneg %p524
    $region46: #{constrained_conv2d.1} parent=5 // pred_check_branch
      %527 = sbr.rel (%p525) target = $region48
    $region47: #{constrained_conv2d.1} parent=5 // pred_region
      %s528 = ssub.s32 %s11, 2
      // Predicated region
      $region49: #{constrained_conv2d.1} parent=47 // pred_check
        %p529 = pneg %p180
      $region50: #{constrained_conv2d.1} parent=47 // pred_check_branch
        %531 = sbr.rel (%p529) target = $region52
      $region51: #{constrained_conv2d.1} parent=47 // pred_region
        %p532 = scmp.lt.s32.totalorder %s22, 1
        %s533 = scalar_select %p532, %s22, 1
        %p534 = scmp.lt.s32.totalorder %s23, 1
        %s535 = scalar_select %p534, %s23, 1
        %s536 = smul.addr %s533, 2
        %s537 = sadd.s32 %s535, %s536
        %s538 = smul.addr %s537, 8
        %s539 = scalar_lea.vmem %s5, %s538
      $region52: #{constrained_conv2d.1} parent=47 // pred_fallthru
        _
    $region48: #{constrained_conv2d.1} parent=5 // pred_fallthru
      _
  $region6: #{constrained_conv2d.1} parent=0 // loop_footer
    %s15 = sadd.s32 1, %s11
  $region7: #{constrained_conv2d.1} parent=0 // loop_footer_branch
    %10 = sbr.rel target = $region3
  $region8: #{constrained_conv2d.1} parent=0 // loop_exit
    _

</llo_original>
